<compile_context>
chip_gen: v5e
topology: v5e:2x2
jax: 0.10.0
libtpu: 0.0.40
codegen_flags: <defaults>
</compile_context>

<pallas_src>
import jax
import jax.numpy as jnp
from jax.experimental import pallas as pl
from jax.experimental.pallas import tpu as pltpu

HIDDEN = 10          # fixed by the module definition (fc1 out / LayerNorm dim)
HIDDEN_PAD = 128     # pad hidden lane dim to one full vreg lane width
LN_EPS = 1e-5        # nn.LayerNorm default
TILE_B_CAP = 8192    # sanity cap on the batch tile ("several thousand rows")


def _round_up(x: int, m: int) -> int:
    return (x + m - 1) // m * m


def _vmem_capacity_bytes() -> int:
    """Per-generation VMEM capacity; conservative fallback = v7x's 64 MiB/TC."""
    try:
        info = pltpu.get_tpu_info()
        for name in ("vmem_capacity_bytes", "vmem_size_bytes", "vmem_bytes"):
            cap = getattr(info, name, None)
            if cap:
                return int(cap)
    except Exception:
        pass
    return 64 << 20


def _choose_tile_b(batch: int, in_features: int, out_sub: int,
                   vmem_budget: int) -> int:
    """Largest batch tile (multiple of 128, or the full batch) that fits the
    VMEM budget with double-buffered x/out blocks and single-buffered weights."""
    weight_bytes = 4 * (in_features * HIDDEN_PAD + out_sub * HIDDEN_PAD + out_sub)
    # double-buffered x + out blocks, plus f32 intermediates (h, hn, ot).
    per_row = 4 * (2 * in_features + 3 * out_sub + 3 * HIDDEN_PAD)
    avail = max(vmem_budget - weight_bytes - (2 << 20), per_row * 128)
    tile = min(avail // per_row, TILE_B_CAP)
    if tile >= batch:
        if batch > 256:
            # keep >= 2 grid steps so ("parallel",) can shard across v7x's 2 TCs
            tile = _round_up(pl.cdiv(batch, 2), 128)
        else:
            tile = batch                       # single full-extent block
    else:
        tile = max((tile // 128) * 128, 128)   # lane-dense output blocks
    return int(tile)


def toy_model_kernel(x_ref, w1t_ref, w2g_ref, beta_ref, ot_ref):
    # ---- fc1 (no bias): (TB, F) @ (F, 128) on the MXU; cols 10..127 are 0 ----
    h = jnp.dot(x_ref[...], w1t_ref[...], preferred_element_type=jnp.float32)

    # ---- ReLU (padded lanes stay exactly 0) ----
    h = jnp.maximum(h, 0.0)

    # ---- LayerNorm over the 10 real lanes (biased variance, like torch) ----
    # Pad lanes of h are 0, so plain 128-lane sums * (1/10) give the true
    # mean and E[h^2]; no lane mask / iota needed.
    inv_n = jnp.float32(1.0 / HIDDEN)
    mean = jnp.sum(h, axis=-1, keepdims=True) * inv_n
    ex2 = jnp.sum(h * h, axis=-1, keepdims=True) * inv_n
    var = ex2 - mean * mean
    hn = (h - mean) * jax.lax.rsqrt(var + LN_EPS)
    # Pad lanes of hn equal -mean*rsqrt (nonzero), but the matching columns of
    # w2g are zero, so they contribute nothing to fc2.

    # ---- fc2 (gamma folded into w2g, beta folded into beta_col), computed
    #      transposed so the store is lane-dense along the batch axis:
    #      out^T[n, b] = sum_h w2g[n, h] * hn[b, h] + beta_col[n, 0] ----
    ot = jax.lax.dot_general(
        w2g_ref[...], hn, (((1,), (1,)), ((), ())),
        preferred_element_type=jnp.float32)
    ot_ref[...] = (ot + beta_ref[...]).astype(ot_ref.dtype)


def prepare_params(w1, w2, gamma, beta):
    """Fold gamma/beta into fc2 and pad the weights ONCE (not per forward).
    w1: (10, in_features); w2: (out_features, 10); gamma/beta: (10,)."""
    out_features, _ = w2.shape
    in_features = w1.shape[1]
    out_sub = _round_up(out_features, 8)

    # fc1 weights, transposed and hidden-padded 10 -> 128 with zeros.
    w1t_pad = jnp.zeros((in_features, HIDDEN_PAD), jnp.float32)
    w1t_pad = w1t_pad.at[:, :HIDDEN].set(jnp.transpose(w1).astype(jnp.float32))

    # fc2 with gamma folded in, kept row-major (out_sub, 128): rows/cols beyond
    # the real extents are zero.
    w2g = jnp.zeros((out_sub, HIDDEN_PAD), jnp.float32)
    w2g = w2g.at[:out_features, :HIDDEN].set(
        (gamma[None, :] * w2).astype(jnp.float32))

    # beta folded through fc2: a single (out_sub, 1) bias column.
    beta_col = jnp.zeros((out_sub, 1), jnp.float32)
    beta_col = beta_col.at[:out_features, 0].set((w2 @ beta).astype(jnp.float32))

    return w1t_pad, w2g, beta_col, out_features


def toy_model_forward(x, params):
    """x: (B, in_features) f32; params from prepare_params().
    Returns (B, out_features) f32."""
    w1t_pad, w2g, beta_col, out_features = params
    batch, in_features = x.shape
    out_sub = w2g.shape[0]

    # ---- per-generation VMEM budget and batch tile ----
    vmem_cap = _vmem_capacity_bytes()
    vmem_limit = int(min(vmem_cap * 3 // 4, 96 << 20))
    tile_b = _choose_tile_b(batch, in_features, out_sub, vmem_limit)
    grid = (pl.cdiv(batch, tile_b),)

    # ---- advisory cost estimate (kernel is HBM/overhead bound) ----
    flops = 2 * batch * HIDDEN_PAD * (in_features + out_sub)
    bytes_accessed = 4 * (batch * in_features + out_sub * batch
                          + w1t_pad.size + w2g.size + beta_col.size)
    cost = pl.CostEstimate(flops=flops, transcendentals=batch,
                           bytes_accessed=bytes_accessed)

    def build(single_buffer_weights: bool):
        const_kwargs = (
            {"pipeline_mode": pl.Buffered(buffer_count=1)}
            if single_buffer_weights else {})
        in_specs = [
            pl.BlockSpec((tile_b, in_features), lambda i: (i, 0)),          # x
            pl.BlockSpec((in_features, HIDDEN_PAD), lambda i: (0, 0),
                         **const_kwargs),                                    # W1t
            pl.BlockSpec((out_sub, HIDDEN_PAD), lambda i: (0, 0),
                         **const_kwargs),                                    # W2'
            pl.BlockSpec((out_sub, 1), lambda i: (0, 0), **const_kwargs),    # bias
        ]
        return pl.pallas_call(
            toy_model_kernel,
            out_shape=jax.ShapeDtypeStruct((out_sub, batch), jnp.float32),
            grid=grid,
            in_specs=in_specs,
            out_specs=pl.BlockSpec((out_sub, tile_b), lambda i: (0, i)),
            compiler_params=pltpu.CompilerParams(
                dimension_semantics=("parallel",),
                vmem_limit_bytes=vmem_limit),
            cost_estimate=cost,
        )

    try:
        out_t = build(True)(x, w1t_pad, w2g, beta_col)
    except Exception:
        # TODO(synk): pl.Buffered(1) single-buffering unsupported on this jax
        # build; fall back to default double-buffered weight blocks.
        out_t = build(False)(x, w1t_pad, w2g, beta_col)

    # Drop the out_features->out_sub pad and return row-major (B, out_features).
    return jnp.transpose(out_t[:out_features, :])


if __name__ == "__main__":
    batch = 8
    in_features = 32
    out_features = 16

    key = jax.random.PRNGKey(0)
    kx, kw1, kw2, kg, kb = jax.random.split(key, 5)

    # Deterministic synthetic parameters (shapes from ToyModel.__init__).
    x = jax.random.normal(kx, (batch, in_features), dtype=jnp.float32)
    w1 = jax.random.normal(kw1, (HIDDEN, in_features), dtype=jnp.float32) * 0.1
    w2 = jax.random.normal(kw2, (out_features, HIDDEN), dtype=jnp.float32) * 0.1
    gamma = 1.0 + 0.1 * jax.random.normal(kg, (HIDDEN,), dtype=jnp.float32)
    beta = 0.1 * jax.random.normal(kb, (HIDDEN,), dtype=jnp.float32)

    params = prepare_params(w1, w2, gamma, beta)   # fold/pad weights once
    out = toy_model_forward(x, params)
    jax.block_until_ready(out)

    # Pure-JAX reference of the same math (torch prints are debug-only).
    h_ref = jnp.maximum(x @ w1.T, 0.0)
    mu = h_ref.mean(-1, keepdims=True)
    var = ((h_ref - mu) ** 2).mean(-1, keepdims=True)
    ln_ref = (h_ref - mu) / jnp.sqrt(var + LN_EPS) * gamma + beta
    ref = ln_ref @ w2.T
    assert out.shape == (batch, out_features)
    assert jnp.allclose(out, ref, atol=1e-4, rtol=1e-4)

    print("KERNEL_OK")
</pallas_src>

<mosaic_0001>
module attributes {stable_mosaic.version = 11 : i64} {
  func.func @toy_model_kernel(%arg0: i32, %arg1: memref<8x32xf32, #tpu.memory_space<vmem>>, %arg2: memref<32x128xf32, #tpu.memory_space<vmem>>, %arg3: memref<16x128xf32, #tpu.memory_space<vmem>>, %arg4: memref<16x1xf32, #tpu.memory_space<vmem>>, %arg5: memref<16x8xf32, #tpu.memory_space<vmem>>) attributes {dimension_semantics = [#tpu.dimension_semantics<parallel>], iteration_bounds = array<i64: 1>, scalar_prefetch = 0 : i64, scratch_operands = 0 : i64, tpu.core_type = #tpu.core_type<tc>, window_params = [{transform_indices = @transform_0, window_bounds = array<i64: 8, 32>}, {pipeline_mode = #tpu.pipeline_mode<synchronous>, transform_indices = @transform_1, window_bounds = array<i64: 32, 128>}, {pipeline_mode = #tpu.pipeline_mode<synchronous>, transform_indices = @transform_2, window_bounds = array<i64: 16, 128>}, {pipeline_mode = #tpu.pipeline_mode<synchronous>, transform_indices = @transform_3, window_bounds = array<i64: 16, 1>}, {transform_indices = @transform_4, window_bounds = array<i64: 16, 8>}]} {
    %c0 = arith.constant 0 : index
    %c0_0 = arith.constant 0 : index
    %0 = vector.load %arg1[%c0, %c0_0] : memref<8x32xf32, #tpu.memory_space<vmem>>, vector<8x32xf32>
    %c0_1 = arith.constant 0 : index
    %c0_2 = arith.constant 0 : index
    %1 = vector.load %arg2[%c0_1, %c0_2] : memref<32x128xf32, #tpu.memory_space<vmem>>, vector<32x128xf32>
    %cst = arith.constant dense<0.000000e+00> : vector<8x128xf32>
    %2 = tpu.matmul %0, %1, %cst {dimension_numbers = #tpu.dot_dimension_numbers<[1], [0], [0], [1], [0, 0, 1, 1], [], []>} : vector<8x32xf32>, vector<32x128xf32>, vector<8x128xf32> -> vector<8x128xf32>
    %cst_3 = arith.constant 0.000000e+00 : f32
    %3 = vector.broadcast %cst_3 : f32 to vector<8x128xf32>
    %4 = arith.maximumf %2, %3 : vector<8x128xf32>
    %cst_4 = arith.constant dense<0.000000e+00> : vector<8xf32>
    %5 = vector.multi_reduction <add>, %4, %cst_4 [1] : vector<8x128xf32> to vector<8xf32>
    %6 = vector.shape_cast %5 : vector<8xf32> to vector<8x1xf32>
    %cst_5 = arith.constant 1.000000e-01 : f32
    %7 = vector.broadcast %cst_5 : f32 to vector<8x1xf32>
    %8 = arith.mulf %6, %7 : vector<8x1xf32>
    %9 = arith.mulf %4, %4 : vector<8x128xf32>
    %cst_6 = arith.constant dense<0.000000e+00> : vector<8xf32>
    %10 = vector.multi_reduction <add>, %9, %cst_6 [1] : vector<8x128xf32> to vector<8xf32>
    %11 = vector.shape_cast %10 : vector<8xf32> to vector<8x1xf32>
    %cst_7 = arith.constant 1.000000e-01 : f32
    %12 = vector.broadcast %cst_7 : f32 to vector<8x1xf32>
    %13 = arith.mulf %11, %12 : vector<8x1xf32>
    %14 = arith.mulf %8, %8 : vector<8x1xf32>
    %15 = arith.subf %13, %14 : vector<8x1xf32>
    %16 = vector.broadcast %8 : vector<8x1xf32> to vector<8x128xf32>
    %17 = arith.subf %4, %16 : vector<8x128xf32>
    %cst_8 = arith.constant 9.99999974E-6 : f32
    %18 = vector.broadcast %cst_8 : f32 to vector<8x1xf32>
    %19 = arith.addf %15, %18 : vector<8x1xf32>
    %20 = math.rsqrt %19 : vector<8x1xf32>
    %21 = vector.broadcast %20 : vector<8x1xf32> to vector<8x128xf32>
    %22 = arith.mulf %17, %21 : vector<8x128xf32>
    %c0_9 = arith.constant 0 : index
    %c0_10 = arith.constant 0 : index
    %23 = vector.load %arg3[%c0_9, %c0_10] : memref<16x128xf32, #tpu.memory_space<vmem>>, vector<16x128xf32>
    %cst_11 = arith.constant dense<0.000000e+00> : vector<16x8xf32>
    %24 = tpu.matmul %23, %22, %cst_11 {dimension_numbers = #tpu.dot_dimension_numbers<[1], [1], [0], [0], [0, 0, 1, 0], [], []>} : vector<16x128xf32>, vector<8x128xf32>, vector<16x8xf32> -> vector<16x8xf32>
    %c0_12 = arith.constant 0 : index
    %c0_13 = arith.constant 0 : index
    %25 = vector.load %arg4[%c0_12, %c0_13] : memref<16x1xf32, #tpu.memory_space<vmem>>, vector<16x1xf32>
    %26 = vector.broadcast %25 : vector<16x1xf32> to vector<16x8xf32>
    %27 = arith.addf %24, %26 : vector<16x8xf32>
    %c0_14 = arith.constant 0 : index
    %c0_15 = arith.constant 0 : index
    %28 = vector.load %arg5[%c0_14, %c0_15] : memref<16x8xf32, #tpu.memory_space<vmem>>, vector<16x8xf32>
    tpu.vector_store %arg5[%c0_14, %c0_15], %27 {strides = array<i32>} : memref<16x8xf32, #tpu.memory_space<vmem>>, vector<16x8xf32>,
    return
  }
  func.func @transform_0(%arg0: i32) -> (i32, i32) {
    %c0_i32 = arith.constant 0 : i32
    %c0_i32_0 = arith.constant 0 : i32
    return %arg0, %c0_i32 : i32, i32
  }
  func.func @transform_1(%arg0: i32) -> (i32, i32) {
    %c0_i32 = arith.constant 0 : i32
    %c0_i32_0 = arith.constant 0 : i32
    %c0_i32_1 = arith.constant 0 : i32
    return %c0_i32, %c0_i32_0 : i32, i32
  }
  func.func @transform_2(%arg0: i32) -> (i32, i32) {
    %c0_i32 = arith.constant 0 : i32
    %c0_i32_0 = arith.constant 0 : i32
    %c0_i32_1 = arith.constant 0 : i32
    return %c0_i32, %c0_i32_0 : i32, i32
  }
  func.func @transform_3(%arg0: i32) -> (i32, i32) {
    %c0_i32 = arith.constant 0 : i32
    %c0_i32_0 = arith.constant 0 : i32
    %c0_i32_1 = arith.constant 0 : i32
    return %c0_i32, %c0_i32_0 : i32, i32
  }
  func.func @transform_4(%arg0: i32) -> (i32, i32) {
    %c0_i32 = arith.constant 0 : i32
    %c0_i32_0 = arith.constant 0 : i32
    return %c0_i32, %arg0 : i32, i32
  }
}

module attributes {stable_mosaic.version = 11 : i64} {
  func.func @toy_model_kernel(%arg0: i32, %arg1: memref<8x32xf32, #tpu.memory_space<vmem>>, %arg2: memref<32x128xf32, #tpu.memory_space<vmem>>, %arg3: memref<16x128xf32, #tpu.memory_space<vmem>>, %arg4: memref<16x1xf32, #tpu.memory_space<vmem>>, %arg5: memref<16x8xf32, #tpu.memory_space<vmem>>) attributes {dimension_semantics = [#tpu.dimension_semantics<parallel>], iteration_bounds = array<i64: 1>, scalar_prefetch = 0 : i64, scratch_operands = 0 : i64, tpu.core_type = #tpu.core_type<tc>, window_params = [{transform_indices = @transform_0, window_bounds = array<i64: 8, 32>}, {pipeline_mode = #tpu.pipeline_mode<synchronous>, transform_indices = @transform_1, window_bounds = array<i64: 32, 128>}, {pipeline_mode = #tpu.pipeline_mode<synchronous>, transform_indices = @transform_2, window_bounds = array<i64: 16, 128>}, {pipeline_mode = #tpu.pipeline_mode<synchronous>, transform_indices = @transform_3, window_bounds = array<i64: 16, 1>}, {transform_indices = @transform_4, window_bounds = array<i64: 16, 8>}]} {
    %c0 = arith.constant 0 : index
    %c0_0 = arith.constant 0 : index
    %0 = vector.load %arg1[%c0, %c0_0] : memref<8x32xf32, #tpu.memory_space<vmem>>, vector<8x32xf32>
    %c0_1 = arith.constant 0 : index
    %c0_2 = arith.constant 0 : index
    %1 = vector.load %arg2[%c0_1, %c0_2] : memref<32x128xf32, #tpu.memory_space<vmem>>, vector<32x128xf32>
    %cst = arith.constant dense<0.000000e+00> : vector<8x128xf32>
    %2 = tpu.matmul %0, %1, %cst {dimension_numbers = #tpu.dot_dimension_numbers<[1], [0], [0], [1], [0, 0, 1, 1], [], []>} : vector<8x32xf32>, vector<32x128xf32>, vector<8x128xf32> -> vector<8x128xf32>
    %cst_3 = arith.constant 0.000000e+00 : f32
    %3 = vector.broadcast %cst_3 : f32 to vector<8x128xf32>
    %4 = arith.maximumf %2, %3 : vector<8x128xf32>
    %cst_4 = arith.constant dense<0.000000e+00> : vector<8xf32>
    %5 = vector.multi_reduction <add>, %4, %cst_4 [1] : vector<8x128xf32> to vector<8xf32>
    %6 = vector.shape_cast %5 : vector<8xf32> to vector<8x1xf32>
    %cst_5 = arith.constant 1.000000e-01 : f32
    %7 = vector.broadcast %cst_5 : f32 to vector<8x1xf32>
    %8 = arith.mulf %6, %7 : vector<8x1xf32>
    %9 = arith.mulf %4, %4 : vector<8x128xf32>
    %cst_6 = arith.constant dense<0.000000e+00> : vector<8xf32>
    %10 = vector.multi_reduction <add>, %9, %cst_6 [1] : vector<8x128xf32> to vector<8xf32>
    %11 = vector.shape_cast %10 : vector<8xf32> to vector<8x1xf32>
    %cst_7 = arith.constant 1.000000e-01 : f32
    %12 = vector.broadcast %cst_7 : f32 to vector<8x1xf32>
    %13 = arith.mulf %11, %12 : vector<8x1xf32>
    %14 = arith.mulf %8, %8 : vector<8x1xf32>
    %15 = arith.subf %13, %14 : vector<8x1xf32>
    %16 = vector.broadcast %8 : vector<8x1xf32> to vector<8x128xf32>
    %17 = arith.subf %4, %16 : vector<8x128xf32>
    %cst_8 = arith.constant 9.99999974E-6 : f32
    %18 = vector.broadcast %cst_8 : f32 to vector<8x1xf32>
    %19 = arith.addf %15, %18 : vector<8x1xf32>
    %20 = math.rsqrt %19 : vector<8x1xf32>
    %21 = vector.broadcast %20 : vector<8x1xf32> to vector<8x128xf32>
    %22 = arith.mulf %17, %21 : vector<8x128xf32>
    %c0_9 = arith.constant 0 : index
    %c0_10 = arith.constant 0 : index
    %23 = vector.load %arg3[%c0_9, %c0_10] : memref<16x128xf32, #tpu.memory_space<vmem>>, vector<16x128xf32>
    %cst_11 = arith.constant dense<0.000000e+00> : vector<16x8xf32>
    %24 = tpu.matmul %23, %22, %cst_11 {dimension_numbers = #tpu.dot_dimension_numbers<[1], [1], [0], [0], [0, 0, 1, 0], [], []>} : vector<16x128xf32>, vector<8x128xf32>, vector<16x8xf32> -> vector<16x8xf32>
    %c0_12 = arith.constant 0 : index
    %c0_13 = arith.constant 0 : index
    %25 = vector.load %arg4[%c0_12, %c0_13] : memref<16x1xf32, #tpu.memory_space<vmem>>, vector<16x1xf32>
    %26 = vector.broadcast %25 : vector<16x1xf32> to vector<16x8xf32>
    %27 = arith.addf %24, %26 : vector<16x8xf32>
    %c0_14 = arith.constant 0 : index
    %c0_15 = arith.constant 0 : index
    %28 = vector.load %arg5[%c0_14, %c0_15] : memref<16x8xf32, #tpu.memory_space<vmem>>, vector<16x8xf32>
    tpu.vector_store %arg5[%c0_14, %c0_15], %27 {strides = array<i32>} : memref<16x8xf32, #tpu.memory_space<vmem>>, vector<16x8xf32>,
    return
  }
  func.func @transform_0(%arg0: i32) -> (i32, i32) {
    %c0_i32 = arith.constant 0 : i32
    %c0_i32_0 = arith.constant 0 : i32
    return %arg0, %c0_i32 : i32, i32
  }
  func.func @transform_1(%arg0: i32) -> (i32, i32) {
    %c0_i32 = arith.constant 0 : i32
    %c0_i32_0 = arith.constant 0 : i32
    %c0_i32_1 = arith.constant 0 : i32
    return %c0_i32, %c0_i32_0 : i32, i32
  }
  func.func @transform_2(%arg0: i32) -> (i32, i32) {
    %c0_i32 = arith.constant 0 : i32
    %c0_i32_0 = arith.constant 0 : i32
    %c0_i32_1 = arith.constant 0 : i32
    return %c0_i32, %c0_i32_0 : i32, i32
  }
  func.func @transform_3(%arg0: i32) -> (i32, i32) {
    %c0_i32 = arith.constant 0 : i32
    %c0_i32_0 = arith.constant 0 : i32
    %c0_i32_1 = arith.constant 0 : i32
    return %c0_i32, %c0_i32_0 : i32, i32
  }
  func.func @transform_4(%arg0: i32) -> (i32, i32) {
    %c0_i32 = arith.constant 0 : i32
    %c0_i32_0 = arith.constant 0 : i32
    return %c0_i32, %arg0 : i32, i32
  }
}

</mosaic_0001>

<llo_original>
// kernel: tpu_custom_call.1
$region0: #{tpu_custom_call.1}
  #allocation0 [shape = 'u32[]', space=smem, size = 0x4, offset = 0x4, fixed_abs, tag = 'smem constant byte address 0x4 - core index']
  #allocation1 [shape = 'u32[72,128]{1,0:T(1,128)}', space=vmem, size = 0x9000, scoped, tag = 'internal scratch']
  %s0 = inlined_call_operand.hbm [shape: f32[8,32], index: 0, kind: input, shape index: {}]
  %s1 = inlined_call_operand.hbm [shape: f32[32,128], index: 1, kind: input, shape index: {}]
  %s2 = inlined_call_operand.vmem [shape: f32[16,128], index: 2, kind: input, shape index: {}]
  %s3 = inlined_call_operand.vmem [shape: f32[16,1], index: 3, kind: input, shape index: {}]
  %s4 = inlined_call_operand.vmem [shape: f32[16,8], index: 4, kind: output, shape index: {}]
  %s5 = sld [smem:[#allocation0]]
  $region34: #{tpu_custom_call.1} parent=0
    _
  %s7 = ssub.s32 1, %s5
  %s8 = scalar_select 0, %s7, %s5
  $region1: #{tpu_custom_call.1} parent=0
    #allocation2 [shape = 'u8[4096]{0}', space=vmem, size = 0x1000, scoped, tag = 'input window, operand 0, single buffered']
    #allocation3 [shape = 's32[1]{0}', space=sflag, size = 0x4, scoped, tag = 'scoped memory for tpu_custom_call.1']
    #allocation4 [shape = 'u8[16384]{0}', space=vmem, size = 0x4000, scoped, tag = 'input window, operand 1, single buffered']
    #allocation5 [shape = 's32[1]{0}', space=sflag, size = 0x4, scoped, tag = 'scoped memory for tpu_custom_call.1']
    %9 = vsyncpa [#allocation3], 0
    %10 = vsyncpa [#allocation5], 0
    // Predicated region
    $region2: #{tpu_custom_call.1} parent=1 // pred_check
      _
    $region3: #{tpu_custom_call.1} parent=1 // pred_check_branch
      %12 = sbr.rel (0) target = $region5
    $region4: #{tpu_custom_call.1} parent=1 // pred_region
      %14 = vsyncadd [#allocation3], 0
      %s16 = sshll.u32 %s0, 4
      %s17 = int_to_ptr.hbm [resolvable:$true] %s16
      %s18 = sshll.u32 [#allocation2], 4
      %s19 = int_to_ptr.vmem [resolvable:$true] %s18
      %21 = dma.hbm_to_vmem [thread:$0]  %s17, 128, %s19, [#allocation3]
    $region5: #{tpu_custom_call.1} parent=1 // pred_fallthru
      _
    // Predicated region
    $region6: #{tpu_custom_call.1} parent=1 // pred_check
      _
    $region7: #{tpu_custom_call.1} parent=1 // pred_check_branch
      %23 = sbr.rel (0) target = $region9
    $region8: #{tpu_custom_call.1} parent=1 // pred_region
      %25 = vsyncadd [#allocation5], 0
      %s26 = sshll.u32 %s1, 4
      %s27 = int_to_ptr.hbm [resolvable:$true] %s26
      %s28 = sshll.u32 [#allocation4], 4
      %s29 = int_to_ptr.vmem [resolvable:$true] %s28
      %34 = dma.hbm_to_vmem [thread:$0]  %s27, 512, %s29, [#allocation5], 128, 128, 8
    $region9: #{tpu_custom_call.1} parent=1 // pred_fallthru
      _
    // Predicated region
    $region10: #{tpu_custom_call.1} parent=1 // pred_check
      _
    $region11: #{tpu_custom_call.1} parent=1 // pred_check_branch
      %36 = sbr.rel (0) target = $region13
    $region12: #{tpu_custom_call.1} parent=1 // pred_region
      _
    $region13: #{tpu_custom_call.1} parent=1 // pred_fallthru
      _
    // Predicated region
    $region14: #{tpu_custom_call.1} parent=1 // pred_check
      _
    $region15: #{tpu_custom_call.1} parent=1 // pred_check_branch
      %38 = sbr.rel (0) target = $region17
    $region16: #{tpu_custom_call.1} parent=1 // pred_region
      _
    $region17: #{tpu_custom_call.1} parent=1 // pred_fallthru
      _
    // Predicated region
    $region18: #{tpu_custom_call.1} parent=1 // pred_check
      _
    $region19: #{tpu_custom_call.1} parent=1 // pred_check_branch
      %40 = sbr.rel (0) target = $region21
    $region20: #{tpu_custom_call.1} parent=1 // pred_region
      %42 = dma.done [#allocation3], 128
    $region21: #{tpu_custom_call.1} parent=1 // pred_fallthru
      _
    // Predicated region
    $region22: #{tpu_custom_call.1} parent=1 // pred_check
      _
    $region23: #{tpu_custom_call.1} parent=1 // pred_check_branch
      %44 = sbr.rel (0) target = $region25
    $region24: #{tpu_custom_call.1} parent=1 // pred_region
      %46 = dma.done [#allocation5], 512
    $region25: #{tpu_custom_call.1} parent=1 // pred_fallthru
      _
    %v47 = vld [vmem:[#allocation2] sm:$0xff]
    %v48 = vld [vmem:[#allocation4] sm:$0xff]
    %v49 = vld [vmem:[#allocation4 + $0x8] sm:$0xff]
    %v50 = vld [vmem:[#allocation4 + $0x10] sm:$0xff]
    %v51 = vld [vmem:[#allocation4 + $0x18] sm:$0xff]
    %vm52 = vcmask 261120
    %v54 = vsel %vm52, %v47, 0
    %56 = vmatpush.msra.mxu0 0.0
    %57 = vmatpush.msra.mxu0 0.0
    %58 = vmatpush.msra.mxu0 0.0
    %59 = vmatpush.msra.mxu0 0.0
    %60 = vmatpush.msra.mxu0 0.0
    %61 = vmatpush.msra.mxu0 0.0
    %62 = vmatpush.msra.mxu0 0.0
    %63 = vmatpush.msra.mxu0 0.0
    %64 = vmatpush.msra.mxu0 0.0
    %65 = vmatpush.msra.mxu0 0.0
    %66 = vmatpush.msra.mxu0 0.0
    %67 = vmatpush.msra.mxu0 0.0
    %68 = vmatpush.msra.mxu0 %v51
    %69 = vmatpush.msra.mxu0 %v50
    %70 = vmatpush.msra.mxu0 %v49
    %71 = vmatpush.msra.mxu0 %v48
    %72 = vmatmul.f32.gmra.mxu0 %v54
    %v73 = vpop.f32.mrf.mxu0
    %v74 = vadd.f32 0.0, %v73
    %75 = vdwg.mxu0
    %v76 = vmax.f32 %v74, 0.0
    %77 = vadd.xlane.f32.xlu0 %v76
    %v78 = vpop.xlane.xlu0 %77
    %v79 = vmul.f32 %v78, 0.1
    %v80 = vmul.f32 %v76, %v76
    %81 = vadd.xlane.f32.xlu0 %v80
    %v82 = vpop.xlane.xlu0 %81
    %v83 = vmul.f32 %v82, 0.1
    %v84 = vmul.f32 %v79, %v79
    %v85 = vsub.f32 %v83, %v84
    %v86 = vsub.f32 %v76, %v79
    %v87 = vadd.f32 %v85, 1e-05
    %v88 = vrsqrt.pop %v87
    %v89 = vmul.f32 %v88, %v87
    %v90 = vmul.f32 %v89, %v88
    %v91 = vmul.f32 0.5, %v90
    %v92 = vsub.f32 1.5, %v91
    %v93 = vmul.f32 %v88, %v92
    %vm94 = vweird.f32 %v87
    %vm95 = vweird.f32 %v88
    %vm96 = vmor %vm94, %vm95
    %v97 = vsel %vm96, %v88, %v93
    %v98 = vmul.f32 %v86, %v97
    %v99 = vld [vmem:[%s2] sm:$0xff]
    %v100 = vld [vmem:[%s2 + $0x8] sm:$0xff]
    %v101 = vld [vmem:[%s3] sm:$0xff]
    %v102 = vld [vmem:[%s3 + $0x8] sm:$0xff]
    %104 = vset.pattern.permute.xlu0 0
    %105 = vperm.xlu0 %104, %v101
    %v106 = vpop.permute.xlu0 %105
    %109 = vset.pattern.permute.xlu0 0
    %110 = vperm.xlu0 %109, %v102
    %v111 = vpop.permute.xlu0 %110
    %113 = vmatpush.xpose.msra.mxu0 0.0
    %114 = vmatpush.xpose.msra.mxu0 0.0
    %115 = vmatpush.xpose.msra.mxu0 0.0
    %116 = vmatpush.xpose.msra.mxu0 0.0
    %117 = vmatpush.xpose.msra.mxu0 0.0
    %118 = vmatpush.xpose.msra.mxu0 0.0
    %119 = vmatpush.xpose.msra.mxu0 0.0
    %120 = vmatpush.xpose.msra.mxu0 0.0
    %121 = vmatpush.xpose.msra.mxu0 0.0
    %122 = vmatpush.xpose.msra.mxu0 0.0
    %123 = vmatpush.xpose.msra.mxu0 0.0
    %124 = vmatpush.xpose.msra.mxu0 0.0
    %125 = vmatpush.xpose.msra.mxu0 0.0
    %126 = vmatpush.xpose.msra.mxu0 0.0
    %127 = vmatpush.xpose.msra.mxu0 0.0
    %128 = vmatpush.xpose.msra.mxu0 %v98
    %129 = vmatmul.f32.gmra.mxu0 %v99
    %v130 = vpop.f32.mrf.mxu0
    %v131 = vadd.f32 %v106, %v130
    %132 = vmatmul.f32.gmra.mxu0 %v100
    %v133 = vpop.f32.mrf.mxu0
    %v134 = vadd.f32 %v111, %v133
    %135 = vdwg.mxu0
    %vm136 = vcmask 64512
    %137 = vst.msk [vmem:[%s4] sm:$0xff] %vm136, %v131
    %138 = vst.msk [vmem:[%s4 + $0x8] sm:$0xff] %vm136, %v134
    // Predicated region
    $region26: #{tpu_custom_call.1} parent=1 // pred_check
      _
    $region27: #{tpu_custom_call.1} parent=1 // pred_check_branch
      %140 = sbr.rel (0) target = $region29
    $region28: #{tpu_custom_call.1} parent=1 // pred_region
      _
    $region29: #{tpu_custom_call.1} parent=1 // pred_fallthru
      _
    // Predicated region
    $region30: #{tpu_custom_call.1} parent=1 // pred_check
      _
    $region31: #{tpu_custom_call.1} parent=1 // pred_check_branch
      %142 = sbr.rel (0) target = $region33
    $region32: #{tpu_custom_call.1} parent=1 // pred_region
      _
    $region33: #{tpu_custom_call.1} parent=1 // pred_fallthru
      _
    %143 = vsyncpa [#allocation3], 1
    %144 = vsyncpa [#allocation5], 1

// kernel: tpu_custom_call.1
$region0: #{tpu_custom_call.1}
  #allocation0 [shape = 'u32[]', space=smem, size = 0x4, offset = 0x4, fixed_abs, tag = 'smem constant byte address 0x4 - core index']
  #allocation1 [shape = 'u32[72,128]{1,0:T(1,128)}', space=vmem, size = 0x9000, scoped, tag = 'internal scratch']
  %s0 = inlined_call_operand.hbm [shape: f32[8,32], index: 0, kind: input, shape index: {}]
  %s1 = inlined_call_operand.hbm [shape: f32[32,128], index: 1, kind: input, shape index: {}]
  %s2 = inlined_call_operand.vmem [shape: f32[16,128], index: 2, kind: input, shape index: {}]
  %s3 = inlined_call_operand.vmem [shape: f32[16,1], index: 3, kind: input, shape index: {}]
  %s4 = inlined_call_operand.vmem [shape: f32[16,8], index: 4, kind: output, shape index: {}]
  %s5 = sld [smem:[#allocation0]]
  $region34: #{tpu_custom_call.1} parent=0
    _
  %s7 = ssub.s32 1, %s5
  %s8 = scalar_select 0, %s7, %s5
  $region1: #{tpu_custom_call.1} parent=0
    #allocation2 [shape = 'u8[4096]{0}', space=vmem, size = 0x1000, scoped, tag = 'input window, operand 0, single buffered']
    #allocation3 [shape = 's32[1]{0}', space=sflag, size = 0x4, scoped, tag = 'scoped memory for tpu_custom_call.1']
    #allocation4 [shape = 'u8[16384]{0}', space=vmem, size = 0x4000, scoped, tag = 'input window, operand 1, single buffered']
    #allocation5 [shape = 's32[1]{0}', space=sflag, size = 0x4, scoped, tag = 'scoped memory for tpu_custom_call.1']
    %9 = vsyncpa [#allocation3], 0
    %10 = vsyncpa [#allocation5], 0
    // Predicated region
    $region2: #{tpu_custom_call.1} parent=1 // pred_check
      _
    $region3: #{tpu_custom_call.1} parent=1 // pred_check_branch
      %12 = sbr.rel (0) target = $region5
    $region4: #{tpu_custom_call.1} parent=1 // pred_region
      %14 = vsyncadd [#allocation3], 0
      %s16 = sshll.u32 %s0, 4
      %s17 = int_to_ptr.hbm [resolvable:$true] %s16
      %s18 = sshll.u32 [#allocation2], 4
      %s19 = int_to_ptr.vmem [resolvable:$true] %s18
      %21 = dma.hbm_to_vmem [thread:$0]  %s17, 128, %s19, [#allocation3]
    $region5: #{tpu_custom_call.1} parent=1 // pred_fallthru
      _
    // Predicated region
    $region6: #{tpu_custom_call.1} parent=1 // pred_check
      _
    $region7: #{tpu_custom_call.1} parent=1 // pred_check_branch
      %23 = sbr.rel (0) target = $region9
    $region8: #{tpu_custom_call.1} parent=1 // pred_region
      %25 = vsyncadd [#allocation5], 0
      %s26 = sshll.u32 %s1, 4
      %s27 = int_to_ptr.hbm [resolvable:$true] %s26
      %s28 = sshll.u32 [#allocation4], 4
      %s29 = int_to_ptr.vmem [resolvable:$true] %s28
      %34 = dma.hbm_to_vmem [thread:$0]  %s27, 512, %s29, [#allocation5], 128, 128, 8
    $region9: #{tpu_custom_call.1} parent=1 // pred_fallthru
      _
    // Predicated region
    $region10: #{tpu_custom_call.1} parent=1 // pred_check
      _
    $region11: #{tpu_custom_call.1} parent=1 // pred_check_branch
      %36 = sbr.rel (0) target = $region13
    $region12: #{tpu_custom_call.1} parent=1 // pred_region
      _
    $region13: #{tpu_custom_call.1} parent=1 // pred_fallthru
      _
    // Predicated region
    $region14: #{tpu_custom_call.1} parent=1 // pred_check
      _
    $region15: #{tpu_custom_call.1} parent=1 // pred_check_branch
      %38 = sbr.rel (0) target = $region17
    $region16: #{tpu_custom_call.1} parent=1 // pred_region
      _
    $region17: #{tpu_custom_call.1} parent=1 // pred_fallthru
      _
    // Predicated region
    $region18: #{tpu_custom_call.1} parent=1 // pred_check
      _
    $region19: #{tpu_custom_call.1} parent=1 // pred_check_branch
      %40 = sbr.rel (0) target = $region21
    $region20: #{tpu_custom_call.1} parent=1 // pred_region
      %42 = dma.done [#allocation3], 128
    $region21: #{tpu_custom_call.1} parent=1 // pred_fallthru
      _
    // Predicated region
    $region22: #{tpu_custom_call.1} parent=1 // pred_check
      _
    $region23: #{tpu_custom_call.1} parent=1 // pred_check_branch
      %44 = sbr.rel (0) target = $region25
    $region24: #{tpu_custom_call.1} parent=1 // pred_region
      %46 = dma.done [#allocation5], 512
    $region25: #{tpu_custom_call.1} parent=1 // pred_fallthru
      _
    %v47 = vld [vmem:[#allocation2] sm:$0xff]
    %v48 = vld [vmem:[#allocation4] sm:$0xff]
    %v49 = vld [vmem:[#allocation4 + $0x8] sm:$0xff]
    %v50 = vld [vmem:[#allocation4 + $0x10] sm:$0xff]
    %v51 = vld [vmem:[#allocation4 + $0x18] sm:$0xff]
    %vm52 = vcmask 261120
    %v54 = vsel %vm52, %v47, 0
    %56 = vmatpush.msra.mxu0 0.0
    %57 = vmatpush.msra.mxu0 0.0
    %58 = vmatpush.msra.mxu0 0.0
    %59 = vmatpush.msra.mxu0 0.0
    %60 = vmatpush.msra.mxu0 0.0
    %61 = vmatpush.msra.mxu0 0.0
    %62 = vmatpush.msra.mxu0 0.0
    %63 = vmatpush.msra.mxu0 0.0
    %64 = vmatpush.msra.mxu0 0.0
    %65 = vmatpush.msra.mxu0 0.0
    %66 = vmatpush.msra.mxu0 0.0
    %67 = vmatpush.msra.mxu0 0.0
    %68 = vmatpush.msra.mxu0 %v51
    %69 = vmatpush.msra.mxu0 %v50
    %70 = vmatpush.msra.mxu0 %v49
    %71 = vmatpush.msra.mxu0 %v48
    %72 = vmatmul.f32.gmra.mxu0 %v54
    %v73 = vpop.f32.mrf.mxu0
    %v74 = vadd.f32 0.0, %v73
    %75 = vdwg.mxu0
    %v76 = vmax.f32 %v74, 0.0
    %77 = vadd.xlane.f32.xlu0 %v76
    %v78 = vpop.xlane.xlu0 %77
    %v79 = vmul.f32 %v78, 0.1
    %v80 = vmul.f32 %v76, %v76
    %81 = vadd.xlane.f32.xlu0 %v80
    %v82 = vpop.xlane.xlu0 %81
    %v83 = vmul.f32 %v82, 0.1
    %v84 = vmul.f32 %v79, %v79
    %v85 = vsub.f32 %v83, %v84
    %v86 = vsub.f32 %v76, %v79
    %v87 = vadd.f32 %v85, 1e-05
    %v88 = vrsqrt.pop %v87
    %v89 = vmul.f32 %v88, %v87
    %v90 = vmul.f32 %v89, %v88
    %v91 = vmul.f32 0.5, %v90
    %v92 = vsub.f32 1.5, %v91
    %v93 = vmul.f32 %v88, %v92
    %vm94 = vweird.f32 %v87
    %vm95 = vweird.f32 %v88
    %vm96 = vmor %vm94, %vm95
    %v97 = vsel %vm96, %v88, %v93
    %v98 = vmul.f32 %v86, %v97
    %v99 = vld [vmem:[%s2] sm:$0xff]
    %v100 = vld [vmem:[%s2 + $0x8] sm:$0xff]
    %v101 = vld [vmem:[%s3] sm:$0xff]
    %v102 = vld [vmem:[%s3 + $0x8] sm:$0xff]
    %104 = vset.pattern.permute.xlu0 0
    %105 = vperm.xlu0 %104, %v101
    %v106 = vpop.permute.xlu0 %105
    %109 = vset.pattern.permute.xlu0 0
    %110 = vperm.xlu0 %109, %v102
    %v111 = vpop.permute.xlu0 %110
    %113 = vmatpush.xpose.msra.mxu0 0.0
    %114 = vmatpush.xpose.msra.mxu0 0.0
    %115 = vmatpush.xpose.msra.mxu0 0.0
    %116 = vmatpush.xpose.msra.mxu0 0.0
    %117 = vmatpush.xpose.msra.mxu0 0.0
    %118 = vmatpush.xpose.msra.mxu0 0.0
    %119 = vmatpush.xpose.msra.mxu0 0.0
    %120 = vmatpush.xpose.msra.mxu0 0.0
    %121 = vmatpush.xpose.msra.mxu0 0.0
    %122 = vmatpush.xpose.msra.mxu0 0.0
    %123 = vmatpush.xpose.msra.mxu0 0.0
    %124 = vmatpush.xpose.msra.mxu0 0.0
    %125 = vmatpush.xpose.msra.mxu0 0.0
    %126 = vmatpush.xpose.msra.mxu0 0.0
    %127 = vmatpush.xpose.msra.mxu0 0.0
    %128 = vmatpush.xpose.msra.mxu0 %v98
    %129 = vmatmul.f32.gmra.mxu0 %v99
    %v130 = vpop.f32.mrf.mxu0
    %v131 = vadd.f32 %v106, %v130
    %132 = vmatmul.f32.gmra.mxu0 %v100
    %v133 = vpop.f32.mrf.mxu0
    %v134 = vadd.f32 %v111, %v133
    %135 = vdwg.mxu0
    %vm136 = vcmask 64512
    %137 = vst.msk [vmem:[%s4] sm:$0xff] %vm136, %v131
    %138 = vst.msk [vmem:[%s4 + $0x8] sm:$0xff] %vm136, %v134
    // Predicated region
    $region26: #{tpu_custom_call.1} parent=1 // pred_check
      _
    $region27: #{tpu_custom_call.1} parent=1 // pred_check_branch
      %140 = sbr.rel (0) target = $region29
    $region28: #{tpu_custom_call.1} parent=1 // pred_region
      _
    $region29: #{tpu_custom_call.1} parent=1 // pred_fallthru
      _
    // Predicated region
    $region30: #{tpu_custom_call.1} parent=1 // pred_check
      _
    $region31: #{tpu_custom_call.1} parent=1 // pred_check_branch
      %142 = sbr.rel (0) target = $region33
    $region32: #{tpu_custom_call.1} parent=1 // pred_region
      _
    $region33: #{tpu_custom_call.1} parent=1 // pred_fallthru
      _
    %143 = vsyncpa [#allocation3], 1
    %144 = vsyncpa [#allocation5], 1

</llo_original>
